<compile_context>
chip_gen: v5e
topology: v5e:2x2
jax: 0.10.0
libtpu: 0.0.40
codegen_flags: <defaults>
</compile_context>

<pallas_src>
import functools
import math

import jax
import jax.numpy as jnp
from jax.experimental import pallas as pl
from jax.experimental.pallas import tpu as pltpu


def _focal_loss_kernel(x_ref, y_ref, out_ref, *, gamma, eps, log_eps,
                       log_one_minus_eps, n_rows, block_rows, num_classes,
                       need_mask, sparse_labels):
    """One grid step: focal loss over a (block_rows, C) logits tile, reduced
    over the row (sublane) axis into a lane-dense (1, 1, C) partial sum."""
    i = pl.program_id(0)

    x = x_ref[...].astype(jnp.float32)

    # Numerically stable log-softmax along the lane axis.
    m = jnp.max(x, axis=-1, keepdims=True)
    xm = x - m
    e = jnp.exp(xm)
    s = jnp.sum(e, axis=-1, keepdims=True)
    # clamp(p, eps, 1-eps) applied in log space.
    logp = jnp.clip(xm - jnp.log(s), log_eps, log_one_minus_eps)

    if sparse_labels:
        # y_ref is (block_rows, 1) int32 class labels; build one-hot in-kernel.
        lbl = y_ref[...]
        cls = jax.lax.broadcasted_iota(jnp.int32, (block_rows, num_classes), 1)
        y = (cls == lbl).astype(jnp.float32)
    else:
        y = y_ref[...].astype(jnp.float32)

    loss = -y * logp

    g = float(gamma)
    if g != 0.0:
        # p is only needed for the focal factor.  Approx EUP reciprocal + one
        # Newton-Raphson step ~= exact divide at f32 precision (deliberate,
        # ~1 ulp deviation from the reference softmax).
        inv = pl.reciprocal(s, approx=True)
        inv = inv * (2.0 - s * inv)
        p = jnp.clip(e * inv, eps, 1.0 - eps)
        t = 1.0 - p
        if g.is_integer() and 0 < g <= 32:
            # Integer-gamma fast path: exponentiation by squaring (VPU only).
            n_exp = int(g)
            w = None
            base = t
            while True:
                if n_exp & 1:
                    w = base if w is None else w * base
                n_exp >>= 1
                if n_exp == 0:
                    break
                base = base * base
            loss = loss * w
        else:
            loss = loss * t ** g

    if need_mask:
        # Tail rows of the last block hold unspecified data; zero their
        # contribution with a single (block_rows, 1) iota + one select.
        row = jax.lax.broadcasted_iota(jnp.int32, (block_rows, 1), 0)
        valid = (row + i * block_rows) < n_rows
        loss = jnp.where(valid, loss, 0.0)

    # Reduce only the sublane (row) axis here; the cross-lane reduction and
    # the divide-by-total happen once in the wrapper.
    out_ref[...] = jnp.sum(loss, axis=0, keepdims=True)[None]


def _round_up(v, m):
    return (v + m - 1) // m * m


def focal_loss(x, target=None, gamma=0.0, eps=1e-7, *, labels=None,
               block_rows=None, vmem_limit_bytes=32 * 1024 * 1024):
    """Mean focal loss over all N*C elements.

    x:      (N, C) logits, any float dtype (bf16 accepted as-is; upcast
            happens in-kernel, halving HBM traffic for the logits stream).
    target: (N, C) one-/multi-hot weights (any float/int dtype), OR
    labels:  (N,) integer class ids (sparse fast path; skips the dense
             target HBM stream entirely).
    """
    n, c = x.shape
    sparse = labels is not None
    if sparse:
        y_arg = jnp.reshape(labels, (n, 1)).astype(jnp.int32)
        y_bytes_per_row = 4
    else:
        assert target is not None and target.shape == (n, c)
        y_arg = target
        y_bytes_per_row = c * target.dtype.itemsize

    # Per-row VMEM footprint: 2 pipeline buffers per input stream plus ~6 live
    # f32 temporaries (x, e, logp, y, p/t, loss) inside the kernel.
    per_row = 2 * (c * x.dtype.itemsize + y_bytes_per_row) + 24 * c

    if block_rows is None:
        budget = 8 * 1024 * 1024
        block_rows = budget // max(per_row, 1)
        block_rows = max(8, min(block_rows, 1024, _round_up(n, 8)))
        if n >= 16:
            # Ensure >= 2 grid steps so the "parallel" axis can shard across
            # both TensorCores on v7x (no-op for large N).
            block_rows = min(block_rows, _round_up(pl.cdiv(n, 2), 8))
        block_rows = max(8, (block_rows // 8) * 8)
    assert block_rows % 8 == 0, "block_rows must be a multiple of 8"

    # Guard: with very large C even the minimum 8-row tile can exceed the
    # default scoped VMEM limit; raise it (64 MiB is the physical floor
    # across v5e/v6e/v7x per TensorCore).
    est = block_rows * per_row + 8 * c + (1 << 20)
    if est > vmem_limit_bytes:
        vmem_limit_bytes = min(_round_up(est, 1 << 20), 64 * 1024 * 1024)

    num_blocks = pl.cdiv(n, block_rows)
    need_mask = (n % block_rows) != 0

    kernel = functools.partial(
        _focal_loss_kernel,
        gamma=float(gamma),
        eps=float(eps),
        log_eps=math.log(float(eps)),
        log_one_minus_eps=math.log1p(-float(eps)),
        n_rows=n,
        block_rows=block_rows,
        num_classes=c,
        need_mask=need_mask,
        sparse_labels=sparse,
    )

    if sparse:
        y_spec = pl.BlockSpec((block_rows, 1), lambda i: (i, 0))
    else:
        y_spec = pl.BlockSpec((block_rows, c), lambda i: (i, 0))

    partials = pl.pallas_call(
        kernel,
        out_shape=jax.ShapeDtypeStruct((num_blocks, 1, c), jnp.float32),
        grid_spec=pltpu.PrefetchScalarGridSpec(
            num_scalar_prefetch=0,
            grid=(num_blocks,),
            in_specs=[
                pl.BlockSpec((block_rows, c), lambda i: (i, 0)),
                y_spec,
            ],
            # (1, 1, C) block over a (num_blocks, 1, C) array: last two block
            # dims equal the full array dims -> unmasked lane-dense stores.
            out_specs=pl.BlockSpec((1, 1, c), lambda i: (i, 0, 0)),
        ),
        compiler_params=pltpu.CompilerParams(
            # Each block owns its own output slot -> independent grid steps;
            # "parallel" lets v7x shard the grid across both TensorCores.
            dimension_semantics=("parallel",),
            vmem_limit_bytes=vmem_limit_bytes,
        ),
    )(x, y_arg)

    return jnp.sum(partials) / jnp.float32(n * c)


def focal_loss_reference(x, target, gamma=0.0, eps=1e-7):
    p = jax.nn.softmax(x.astype(jnp.float32), axis=-1)
    p = jnp.clip(p, eps, 1.0 - eps)
    loss = -target.astype(jnp.float32) * jnp.log(p)
    loss = loss * (1.0 - p) ** gamma
    return jnp.mean(loss)


if __name__ == "__main__":
    key = jax.random.PRNGKey(0)
    k1, k2, k3, k4 = jax.random.split(key, 4)

    gamma, eps = 2.0, 1e-7

    # Case 1: aligned N, f32 logits, bf16 one-hot target (dense path, 2 blocks).
    N, C = 16, 128
    x = jax.random.normal(k1, (N, C), dtype=jnp.float32)
    labels = jax.random.randint(k2, (N,), 0, C)
    target = jax.nn.one_hot(labels, C, dtype=jnp.bfloat16)

    out = jax.block_until_ready(focal_loss(x, target, gamma=gamma, eps=eps))
    ref = focal_loss_reference(x, target, gamma=gamma, eps=eps)
    assert jnp.allclose(out, ref, rtol=1e-4, atol=1e-6), (out, ref)

    # Case 2: module defaults (gamma=0) -- no focal factor, no divide needed.
    out0 = jax.block_until_ready(focal_loss(x, target))
    ref0 = focal_loss_reference(x, target)
    assert jnp.allclose(out0, ref0, rtol=1e-4, atol=1e-6), (out0, ref0)

    # Case 3: N not divisible by the row tile -> tail-mask path, 3 grid steps.
    N2, C2 = 20, 128
    x2 = jax.random.normal(k3, (N2, C2), dtype=jnp.float32)
    labels2 = jax.random.randint(k4, (N2,), 0, C2)
    target2 = jax.nn.one_hot(labels2, C2, dtype=jnp.float32)

    out2 = jax.block_until_ready(
        focal_loss(x2, target2, gamma=gamma, eps=eps, block_rows=8))
    ref2 = focal_loss_reference(x2, target2, gamma=gamma, eps=eps)
    assert jnp.allclose(out2, ref2, rtol=1e-4, atol=1e-6), (out2, ref2)

    # Case 4: sparse-label fast path + bf16 logits (single dense HBM stream),
    # auto-sized tiles with a masked tail block.
    x2b = x2.astype(jnp.bfloat16)
    out3 = jax.block_until_ready(
        focal_loss(x2b, labels=labels2, gamma=gamma, eps=eps))
    ref3 = focal_loss_reference(x2b, target2, gamma=gamma, eps=eps)
    assert jnp.allclose(out3, ref3, rtol=1e-4, atol=1e-6), (out3, ref3)

    print("KERNEL_OK")
</pallas_src>

<mosaic_0001>
module attributes {stable_mosaic.version = 11 : i64} {
  func.func @_focal_loss_kernel(%arg0: i32, %arg1: memref<8x128xf32, #tpu.memory_space<vmem>>, %arg2: memref<8x128xbf16, #tpu.memory_space<vmem>>, %arg3: memref<1x1x128xf32, #tpu.memory_space<vmem>>) attributes {dimension_semantics = [#tpu.dimension_semantics<parallel>], iteration_bounds = array<i64: 2>, scalar_prefetch = 0 : i64, scratch_operands = 0 : i64, tpu.core_type = #tpu.core_type<tc>, window_params = [{transform_indices = @transform_0, window_bounds = array<i64: 8, 128>}, {transform_indices = @transform_1, window_bounds = array<i64: 8, 128>}, {transform_indices = @transform_2, window_bounds = array<i64: 1, 1, 128>}]} {
    %c0 = arith.constant 0 : index
    %c0_0 = arith.constant 0 : index
    %0 = vector.load %arg1[%c0, %c0_0] : memref<8x128xf32, #tpu.memory_space<vmem>>, vector<8x128xf32>
    %cst = arith.constant dense<0xFF800000> : vector<8xf32>
    %1 = vector.multi_reduction <maximumf>, %0, %cst [1] : vector<8x128xf32> to vector<8xf32>
    %2 = vector.shape_cast %1 : vector<8xf32> to vector<8x1xf32>
    %3 = vector.broadcast %2 : vector<8x1xf32> to vector<8x128xf32>
    %4 = arith.subf %0, %3 : vector<8x128xf32>
    %5 = math.exp %4 : vector<8x128xf32>
    %cst_1 = arith.constant dense<0.000000e+00> : vector<8xf32>
    %6 = vector.multi_reduction <add>, %5, %cst_1 [1] : vector<8x128xf32> to vector<8xf32>
    %7 = vector.shape_cast %6 : vector<8xf32> to vector<8x1xf32>
    %8 = math.log %7 : vector<8x1xf32>
    %9 = vector.broadcast %8 : vector<8x1xf32> to vector<8x128xf32>
    %10 = arith.subf %4, %9 : vector<8x128xf32>
    %cst_2 = arith.constant -16.1180954 : f32
    %cst_3 = arith.constant -1.00000008E-7 : f32
    %11 = vector.broadcast %cst_2 : f32 to vector<8x128xf32>
    %12 = arith.maximumf %11, %10 : vector<8x128xf32>
    %13 = vector.broadcast %cst_3 : f32 to vector<8x128xf32>
    %14 = arith.minimumf %13, %12 : vector<8x128xf32>
    %c0_4 = arith.constant 0 : index
    %c0_5 = arith.constant 0 : index
    %15 = vector.load %arg2[%c0_4, %c0_5] : memref<8x128xbf16, #tpu.memory_space<vmem>>, vector<8x128xbf16>
    %16 = arith.extf %15 : vector<8x128xbf16> to vector<8x128xf32>
    %cst_6 = arith.constant 0.000000e+00 : f32
    %17 = vector.broadcast %cst_6 : f32 to vector<8x128xf32>
    %18 = arith.subf %17, %16 : vector<8x128xf32>
    %19 = arith.mulf %18, %14 : vector<8x128xf32>
    %20 = tpu.reciprocal %7 {approx = true} : vector<8x1xf32> -> vector<8x1xf32>
    %21 = arith.mulf %7, %20 : vector<8x1xf32>
    %cst_7 = arith.constant 2.000000e+00 : f32
    %22 = vector.broadcast %cst_7 : f32 to vector<8x1xf32>
    %23 = arith.subf %22, %21 : vector<8x1xf32>
    %24 = arith.mulf %20, %23 : vector<8x1xf32>
    %25 = vector.broadcast %24 : vector<8x1xf32> to vector<8x128xf32>
    %26 = arith.mulf %5, %25 : vector<8x128xf32>
    %cst_8 = arith.constant 1.000000e-07 : f32
    %cst_9 = arith.constant 0.99999988 : f32
    %27 = vector.broadcast %cst_8 : f32 to vector<8x128xf32>
    %28 = arith.maximumf %27, %26 : vector<8x128xf32>
    %29 = vector.broadcast %cst_9 : f32 to vector<8x128xf32>
    %30 = arith.minimumf %29, %28 : vector<8x128xf32>
    %cst_10 = arith.constant 1.000000e+00 : f32
    %31 = vector.broadcast %cst_10 : f32 to vector<8x128xf32>
    %32 = arith.subf %31, %30 : vector<8x128xf32>
    %33 = arith.mulf %32, %32 : vector<8x128xf32>
    %34 = arith.mulf %19, %33 : vector<8x128xf32>
    %cst_11 = arith.constant dense<0.000000e+00> : vector<128xf32>
    %35 = vector.multi_reduction <add>, %34, %cst_11 [0] : vector<8x128xf32> to vector<128xf32>
    %36 = vector.shape_cast %35 : vector<128xf32> to vector<1x128xf32>
    %37 = vector.shape_cast %36 : vector<1x128xf32> to vector<1x1x128xf32>
    %c0_12 = arith.constant 0 : index
    %c0_13 = arith.constant 0 : index
    %c0_14 = arith.constant 0 : index
    %38 = vector.load %arg3[%c0_12, %c0_13, %c0_14] : memref<1x1x128xf32, #tpu.memory_space<vmem>>, vector<1x1x128xf32>
    tpu.vector_store %arg3[%c0_12, %c0_13, %c0_14], %37 {strides = array<i32>} : memref<1x1x128xf32, #tpu.memory_space<vmem>>, vector<1x1x128xf32>,
    return
  }
  func.func @transform_0(%arg0: i32) -> (i32, i32) {
    %c0_i32 = arith.constant 0 : i32
    %c0_i32_0 = arith.constant 0 : i32
    return %arg0, %c0_i32 : i32, i32
  }
  func.func @transform_1(%arg0: i32) -> (i32, i32) {
    %c0_i32 = arith.constant 0 : i32
    %c0_i32_0 = arith.constant 0 : i32
    return %arg0, %c0_i32 : i32, i32
  }
  func.func @transform_2(%arg0: i32) -> (i32, i32, i32) {
    %c0_i32 = arith.constant 0 : i32
    %c0_i32_0 = arith.constant 0 : i32
    %c0_i32_1 = arith.constant 0 : i32
    return %arg0, %c0_i32, %c0_i32_0 : i32, i32, i32
  }
}

</mosaic_0001>

<llo_original>
// kernel: tpu_custom_call.1
$region0: #{tpu_custom_call.1}
  #allocation0 [shape = 'u32[]', space=smem, size = 0x4, offset = 0x4, fixed_abs, tag = 'smem constant byte address 0x4 - core index']
  #allocation1 [shape = 'u32[72,128]{1,0:T(1,128)}', space=vmem, size = 0x9000, scoped, tag = 'internal scratch']
  %s0 = inlined_call_operand.hbm [shape: f32[16,128], index: 0, kind: input, shape index: {}]
  %s1 = inlined_call_operand.hbm [shape: bf16[16,128], index: 1, kind: input, shape index: {}]
  %s2 = inlined_call_operand.hbm [shape: f32[2,1,128], index: 2, kind: output, shape index: {}]
  %s3 = sld [smem:[#allocation0]]
  $region49: #{tpu_custom_call.1} parent=0
    _
  %s5 = ssub.s32 1, %s3
  %s6 = scalar_select 0, %s5, %s3
  $region1: #{tpu_custom_call.1} parent=0
    #allocation2 [shape = 'u8[8192]{0}', space=vmem, size = 0x2000, scoped, tag = 'input window, operand 0']
    #allocation3 [shape = 's32[2]{0}', space=sflag, size = 0x8, scoped, tag = 'scoped memory for tpu_custom_call.1']
    #allocation4 [shape = 's32[2]{0}', space=sflag, size = 0x8, scoped, tag = 'scoped memory for tpu_custom_call.1']
    #allocation5 [shape = 'u8[4096]{0}', space=vmem, size = 0x1000, scoped, tag = 'input window, operand 1']
    #allocation6 [shape = 's32[2]{0}', space=sflag, size = 0x8, scoped, tag = 'scoped memory for tpu_custom_call.1']
    #allocation7 [shape = 'u8[1024]{0}', space=vmem, size = 0x400, scoped, tag = 'output window, operand 0']
    %7 = vsyncpa [#allocation3], 0
    %s8 = scalar_lea.sflag [#allocation3], 1
    %9 = vsyncpa %s8, 0
    %10 = vsyncpa [#allocation6], 0
    %s11 = scalar_lea.sflag [#allocation6], 1
    %12 = vsyncpa %s11, 0
    %13 = vsyncpa [#allocation4], 0
    %s14 = scalar_lea.sflag [#allocation4], 1
    %15 = vsyncpa %s14, 0
    loop: start=0, step=1, limit=4
    $region2: #{tpu_custom_call.1} parent=1 // loop_pre_header
      _
    $region3: #{tpu_custom_call.1} parent=1 // loop_header
      %s17 = sphi 0, %s21
      %p18 = scmp.ge.s32.totalorder %s17, 4
      %s27 = sphi 0, %s29
      %s30 = sphi 0, %s27
      %s31 = sphi 0, %s30
      %s47 = sphi 0, %s31
      %s53 = sphi 0, %s55
      %s56 = sphi 0, %s53
      %s57 = sphi 0, %s56
      %s73 = sphi 0, %s57
      %s79 = sphi 0, %s81
      %s82 = sphi 0, %s79
      %s83 = sphi 0, %s82
      %s99 = sphi 0, %s83
    $region4: #{tpu_custom_call.1} parent=1 // loop_header_branch
      %20 = sbr.rel (%p18) target = $region8
    $region5: #{tpu_custom_call.1} parent=1 // loop_body
      %s22 = ssub.s32 %s17, 1
      %s23 = ssub.s32 %s17, 2
      %s24 = sadd.s32 %s17, 1
      %s25 = ssub.s32 %s17, %s24
      %p26 = scmp.eq.s32.totalorder %s25, 0
      %s28 = sadd.s32 %s27, 1
      %s29 = scalar_select %p26, %s27, %s28
      %p32 = pneg %p26
      %p33 = scmp.eq.s32.totalorder %s17, 1
      %p34 = por %p32, %p33
      %p35 = scmp.ne.s32.totalorder %s27, %s30
      %p36 = scmp.eq.s32.totalorder %s17, 0
      %p37 = por %p35, %p36
      %p38 = scmp.ne.s32.totalorder %s27, %s30
      %p39 = scmp.eq.s32.totalorder %s22, 1
      %p40 = por %p38, %p39
      %p41 = scmp.ne.s32.totalorder %s30, %s31
      %p42 = scmp.eq.s32.totalorder %s22, 0
      %p43 = por %p41, %p42
      %p44 = scmp.ne.s32.totalorder %s30, %s31
      %p45 = scmp.eq.s32.totalorder %s23, 1
      %p46 = por %p44, %p45
      %p48 = scmp.ne.s32.totalorder %s31, %s47
      %p49 = scmp.eq.s32.totalorder %s23, 0
      %p50 = por %p48, %p49
      %s51 = ssub.s32 %s17, %s24
      %p52 = scmp.eq.s32.totalorder %s51, 0
      %s54 = sadd.s32 %s53, 1
      %s55 = scalar_select %p52, %s53, %s54
      %p58 = pneg %p52
      %p59 = scmp.eq.s32.totalorder %s17, 1
      %p60 = por %p58, %p59
      %p61 = scmp.ne.s32.totalorder %s53, %s56
      %p62 = scmp.eq.s32.totalorder %s17, 0
      %p63 = por %p61, %p62
      %p64 = scmp.ne.s32.totalorder %s53, %s56
      %p65 = scmp.eq.s32.totalorder %s22, 1
      %p66 = por %p64, %p65
      %p67 = scmp.ne.s32.totalorder %s56, %s57
      %p68 = scmp.eq.s32.totalorder %s22, 0
      %p69 = por %p67, %p68
      %p70 = scmp.ne.s32.totalorder %s56, %s57
      %p71 = scmp.eq.s32.totalorder %s23, 1
      %p72 = por %p70, %p71
      %p74 = scmp.ne.s32.totalorder %s57, %s73
      %p75 = scmp.eq.s32.totalorder %s23, 0
      %p76 = por %p74, %p75
      %s77 = ssub.s32 %s17, %s24
      %p78 = scmp.eq.s32.totalorder %s77, 0
      %s80 = sadd.s32 %s79, 1
      %s81 = scalar_select %p78, %s79, %s80
      %p84 = pneg %p78
      %p85 = scmp.eq.s32.totalorder %s17, 1
      %p86 = por %p84, %p85
      %p87 = scmp.ne.s32.totalorder %s79, %s82
      %p88 = scmp.eq.s32.totalorder %s17, 0
      %p89 = por %p87, %p88
      %p90 = scmp.ne.s32.totalorder %s79, %s82
      %p91 = scmp.eq.s32.totalorder %s22, 1
      %p92 = por %p90, %p91
      %p93 = scmp.ne.s32.totalorder %s82, %s83
      %p94 = scmp.eq.s32.totalorder %s22, 0
      %p95 = por %p93, %p94
      %p96 = scmp.ne.s32.totalorder %s82, %s83
      %p97 = scmp.eq.s32.totalorder %s23, 1
      %p98 = por %p96, %p97
      %p100 = scmp.ne.s32.totalorder %s83, %s99
      %p101 = scmp.eq.s32.totalorder %s23, 0
      %p102 = por %p100, %p101
      %p103 = scmp.le.s32.totalorder 1, %s17
      %p104 = scmp.lt.s32.totalorder %s17, 3
      %p105 = pnand %p103, %p104
      %p106 = pneg %p105
      // Predicated region
      $region9: #{tpu_custom_call.1} parent=5 // pred_check
        _
      $region10: #{tpu_custom_call.1} parent=5 // pred_check_branch
        %108 = sbr.rel (%p105) target = $region12
      $region11: #{tpu_custom_call.1} parent=5 // pred_region
        %s109 = ssub.s32 %s17, 1
      $region12: #{tpu_custom_call.1} parent=5 // pred_fallthru
        _
      %p110 = scmp.lt.s32.totalorder %s17, 2
      // Predicated region
      $region13: #{tpu_custom_call.1} parent=5 // pred_check
        %p111 = pneg %p110
      $region14: #{tpu_custom_call.1} parent=5 // pred_check_branch
        %113 = sbr.rel (%p111) target = $region16
      $region15: #{tpu_custom_call.1} parent=5 // pred_region
        // Predicated region
        $region17: #{tpu_custom_call.1} parent=15 // pred_check
          %p114 = pneg %p37
        $region18: #{tpu_custom_call.1} parent=15 // pred_check_branch
          %116 = sbr.rel (%p114) target = $region20
        $region19: #{tpu_custom_call.1} parent=15 // pred_region
          %s117 = sand.u32 %s27, 1
          %s118 = scalar_lea.sflag [#allocation3], %s117
          %s119 = sand.u32 %s27, 1
          %s120 = smul.addr %s119, 8
          %s121 = scalar_lea.vmem [#allocation2], %s120
          %123 = vsyncadd %s118, 0
          %s124 = smul.addr %s17, 8
          %s125 = scalar_lea.hbm %s0, %s124
          %s127 = sshll.u32 %s125, 4
          %s128 = int_to_ptr.hbm [resolvable:$true] %s127
          %s129 = sshll.u32 %s121, 4
          %s130 = int_to_ptr.vmem [resolvable:$true] %s129
          %132 = dma.hbm_to_vmem [thread:$0]  %s128, 128, %s130, %s118
        $region20: #{tpu_custom_call.1} parent=15 // pred_fallthru
          _
        // Predicated region
        $region21: #{tpu_custom_call.1} parent=15 // pred_check
          %p133 = pneg %p63
        $region22: #{tpu_custom_call.1} parent=15 // pred_check_branch
          %135 = sbr.rel (%p133) target = $region24
        $region23: #{tpu_custom_call.1} parent=15 // pred_region
          %s136 = sand.u32 %s53, 1
          %s137 = scalar_lea.sflag [#allocation6], %s136
          %s138 = sand.u32 %s53, 1
          %s139 = smul.addr %s138, 4
          %s140 = scalar_lea.vmem [#allocation5], %s139
          %142 = vsyncadd %s137, 0
          %s143 = smul.addr %s17, 4
          %s144 = scalar_lea.hbm %s1, %s143
          %s146 = sshll.u32 %s144, 4
          %s147 = int_to_ptr.hbm [resolvable:$true] %s146
          %s148 = sshll.u32 %s140, 4
          %s149 = int_to_ptr.vmem [resolvable:$true] %s148
          %151 = dma.hbm_to_vmem [thread:$0]  %s147, 64, %s149, %s137
        $region24: #{tpu_custom_call.1} parent=15 // pred_fallthru
          _
      $region16: #{tpu_custom_call.1} parent=5 // pred_fallthru
        _
      %p152 = scmp.le.s32.totalorder 1, %s17
      %p153 = scmp.lt.s32.totalorder %s17, 3
      %p154 = pnand %p152, %p153
      %p155 = pneg %p154
      // Predicated region
      $region25: #{tpu_custom_call.1} parent=5 // pred_check
        _
      $region26: #{tpu_custom_call.1} parent=5 // pred_check_branch
        %157 = sbr.rel (%p154) target = $region28
      $region27: #{tpu_custom_call.1} parent=5 // pred_region
        %s158 = ssub.s32 %s17, 1
        %s159 = sand.u32 %s30, 1
        %s160 = scalar_lea.sflag [#allocation3], %s159
        %s161 = sand.u32 %s30, 1
        %s162 = smul.addr %s161, 8
        %s163 = scalar_lea.vmem [#allocation2], %s162
        // Predicated region
        $region29: #{tpu_custom_call.1} parent=27 // pred_check
          %p164 = pneg %p43
        $region30: #{tpu_custom_call.1} parent=27 // pred_check_branch
          %166 = sbr.rel (%p164) target = $region32
        $region31: #{tpu_custom_call.1} parent=27 // pred_region
          %168 = dma.done %s160, 128
        $region32: #{tpu_custom_call.1} parent=27 // pred_fallthru
          _
        %s169 = sand.u32 %s56, 1
        %s170 = scalar_lea.sflag [#allocation6], %s169
        %s171 = sand.u32 %s56, 1
        %s172 = smul.addr %s171, 4
        %s173 = scalar_lea.vmem [#allocation5], %s172
        // Predicated region
        $region33: #{tpu_custom_call.1} parent=27 // pred_check
          %p174 = pneg %p69
        $region34: #{tpu_custom_call.1} parent=27 // pred_check_branch
          %176 = sbr.rel (%p174) target = $region36
        $region35: #{tpu_custom_call.1} parent=27 // pred_region
          %178 = dma.done %s170, 64
        $region36: #{tpu_custom_call.1} parent=27 // pred_fallthru
          _
        %s179 = sand.u32 %s30, 1
        %s180 = scalar_lea.sflag [#allocation3], %s179
        %s181 = sand.u32 %s30, 1
        %s182 = smul.addr %s181, 8
        %s183 = scalar_lea.vmem [#allocation2], %s182
        %p184 = pneg %p43
        %p185 = pneg %p40
        %s186 = sand.u32 %s56, 1
        %s187 = scalar_lea.sflag [#allocation6], %s186
        %s188 = sand.u32 %s56, 1
        %s189 = smul.addr %s188, 4
        %s190 = scalar_lea.vmem [#allocation5], %s189
        %p191 = pneg %p69
        %p192 = pneg %p66
        %p193 = pneg %p95
        %p194 = pneg %p92
        %s195 = sand.u32 %s82, 1
        %s196 = scalar_lea.sflag [#allocation4], %s195
        %s197 = sand.u32 %s82, 1
        %s198 = scalar_lea.vmem [#allocation7], %s197
        %v199 = vld [vmem:[%s163] sm:$0xff]
        %200 = vmax.xlane.f32.xlu0 %v199
        %v201 = vpop.xlane.xlu0 %200
        %v202 = vsub.f32 %v199, %v201
        %v203 = vmul.f32 %v202, 1.442695
        %v204 = vpow.pop %v203
        %205 = vadd.xlane.f32.xlu0 %v204
        %v206 = vpop.xlane.xlu0 %205
        %v207 = vlog2.pop %v206
        %v208 = vmul.f32 %v207, 0.6931472
        %v209 = vsub.f32 %v202, %v208
        %v210 = vmax.f32 %v209, -16.118095
        %v211 = vmin.f32 %v210, -1.0000001e-07
        %v212 = vld [vmem:[%s173] sm:$0xf]
        %v213 = vunpack.c.l.bf16 %v212
        %v214 = vsub.f32 0.0, %v213
        %v215 = vmul.f32 %v214, %v211
        %v216 = vrcp.pop %v206
        %v217 = vmul.f32 %v206, %v216
        %v218 = vsub.f32 2.0, %v217
        %v219 = vmul.f32 %v216, %v218
        %v220 = vmul.f32 %v204, %v219
        %v221 = vmax.f32 %v220, 1e-07
        %v222 = vmin.f32 %v221, 0.9999999
        %v223 = vsub.f32 1.0, %v222
        %v224 = vmul.f32 %v223, %v223
        %v225 = vmul.f32 %v215, %v224
        %v226 = vrot.slane %v225, 4
        %v227 = vadd.f32 %v225, %v226
        %v228 = vrot.slane %v227, 2
        %v229 = vadd.f32 %v227, %v228
        %v230 = vrot.slane %v229, 1
        %v231 = vadd.f32 %v229, %v230
        %232 = vst [vmem:[%s198] sm:$0x1] %v231
        %s233 = sand.u32 %s82, 1
        %s234 = scalar_lea.sflag [#allocation4], %s233
        %s235 = sand.u32 %s82, 1
        %s236 = scalar_lea.vmem [#allocation7], %s235
        // Predicated region
        $region37: #{tpu_custom_call.1} parent=27 // pred_check
          %p237 = pneg %p92
        $region38: #{tpu_custom_call.1} parent=27 // pred_check_branch
          %239 = sbr.rel (%p237) target = $region40
        $region39: #{tpu_custom_call.1} parent=27 // pred_region
          %241 = vsyncadd %s234, 0
          %s242 = scalar_lea.hbm %s2, %s22
          %s244 = sshll.u32 %s236, 4
          %s245 = int_to_ptr.vmem [resolvable:$true] %s244
          %s246 = sshll.u32 %s242, 4
          %s247 = int_to_ptr.hbm [resolvable:$true] %s246
          %249 = dma.vmem_to_hbm [thread:$0]  %s245, 16, %s247, %s234
        $region40: #{tpu_custom_call.1} parent=27 // pred_fallthru
          _
      $region28: #{tpu_custom_call.1} parent=5 // pred_fallthru
        _
      %p250 = scmp.le.s32.totalorder 2, %s17
      // Predicated region
      $region41: #{tpu_custom_call.1} parent=5 // pred_check
        %p251 = pneg %p250
      $region42: #{tpu_custom_call.1} parent=5 // pred_check_branch
        %253 = sbr.rel (%p251) target = $region44
      $region43: #{tpu_custom_call.1} parent=5 // pred_region
        %s254 = ssub.s32 %s17, 2
        // Predicated region
        $region45: #{tpu_custom_call.1} parent=43 // pred_check
          %p255 = pneg %p98
        $region46: #{tpu_custom_call.1} parent=43 // pred_check_branch
          %257 = sbr.rel (%p255) target = $region48
        $region47: #{tpu_custom_call.1} parent=43 // pred_region
          %s258 = sand.u32 %s83, 1
          %s259 = scalar_lea.sflag [#allocation4], %s258
          %s260 = sand.u32 %s83, 1
          %s261 = scalar_lea.vmem [#allocation7], %s260
          %263 = dma.done %s259, 16
        $region48: #{tpu_custom_call.1} parent=43 // pred_fallthru
          _
      $region44: #{tpu_custom_call.1} parent=5 // pred_fallthru
        _
    $region6: #{tpu_custom_call.1} parent=1 // loop_footer
      %s21 = sadd.s32 1, %s17
    $region7: #{tpu_custom_call.1} parent=1 // loop_footer_branch
      %16 = sbr.rel target = $region3
    $region8: #{tpu_custom_call.1} parent=1 // loop_exit
      _
    %264 = vsyncpa [#allocation3], 1
    %s265 = scalar_lea.sflag [#allocation3], 1
    %266 = vsyncpa %s265, 1
    %267 = vsyncpa [#allocation6], 1
    %s268 = scalar_lea.sflag [#allocation6], 1
    %269 = vsyncpa %s268, 1
    %270 = vsyncpa [#allocation4], 1
    %s271 = scalar_lea.sflag [#allocation4], 1
    %272 = vsyncpa %s271, 1

</llo_original>
